<compile_context>
chip_gen: v5e
topology: v5e:2x2
jax: 0.10.0
libtpu: 0.0.40
codegen_flags: <defaults>
</compile_context>

<pallas_src>
import jax
import jax.numpy as jnp
from jax.experimental import pallas as pl
from jax.experimental.pallas import tpu as pltpu


def _round_up(x, m):
    return ((x + m - 1) // m) * m


def _mlp_kernel(x_ref, w1_ref, b1_ref, w2_ref, b2_ref, w3_ref, o_ref):
    # Layer 1: Linear (MXU, bf16 in / f32 acc) + bias + ReLU (f32 VPU).
    h1 = jnp.dot(x_ref[...], w1_ref[...], preferred_element_type=jnp.float32)
    h1 = jnp.maximum(h1 + b1_ref[...], 0.0)

    # Layer 2: Linear + bias + ReLU.
    h2 = jnp.dot(h1.astype(jnp.bfloat16), w2_ref[...],
                 preferred_element_type=jnp.float32)
    h2 = jnp.maximum(h2 + b2_ref[...], 0.0)

    # Layer 3 (out_features == 1): MXU would be <1% occupied, so do a VPU
    # broadcast-multiply + cross-lane reduce and store lane-dense as (1, TILE_B).
    out = jnp.sum(h2 * w3_ref[...], axis=-1)          # (TILE_B,)
    o_ref[...] = out[None, :].astype(o_ref.dtype)     # (1, TILE_B)


def deepsurv_forward(x, params, *, tile_b=1024):
    """x: (B, in_features) float32. Returns (B, 1) float32 (eval-mode dropout)."""
    w1, b1, w2, b2, w3, b3 = params
    B, F = x.shape
    H = w1.shape[1]

    # Lane-dense hidden dimension (zero padding is inert through ReLU + zero rows).
    Hp = _round_up(H, 128)

    # Batch tiling: multiples of 128 keep the MXU M-dim aligned on all generations.
    tb = min(tile_b, _round_up(B, 128))
    Bp = _round_up(B, tb)
    num_tiles = Bp // tb

    # bf16 MXU operands (halves the HBM bytes of the x stream); f32 elsewhere.
    xp = jnp.pad(x, ((0, Bp - B), (0, 0))).astype(jnp.bfloat16)
    w1p = jnp.pad(w1, ((0, 0), (0, Hp - H))).astype(jnp.bfloat16)
    b1p = jnp.pad(b1, ((0, 0), (0, Hp - H))).astype(jnp.float32)
    w2p = jnp.pad(w2, ((0, Hp - H), (0, Hp - H))).astype(jnp.bfloat16)
    b2p = jnp.pad(b2, ((0, 0), (0, Hp - H))).astype(jnp.float32)
    w3p = jnp.pad(w3.reshape(1, H), ((0, 0), (0, Hp - H))).astype(jnp.float32)

    # Weights/biases are pipeline-invariant: constant index maps -> DMA'd once.
    const = lambda shape: pl.BlockSpec(shape, lambda i: (0, 0))

    out = pl.pallas_call(
        _mlp_kernel,
        out_shape=jax.ShapeDtypeStruct((num_tiles, tb), jnp.float32),
        grid=(num_tiles,),
        in_specs=[
            pl.BlockSpec((tb, F), lambda i: (i, 0)),   # x: tiled over batch
            const((F, Hp)),                            # w1
            const((1, Hp)),                            # b1
            const((Hp, Hp)),                           # w2
            const((1, Hp)),                            # b2
            const((1, Hp)),                            # w3 (row)
        ],
        out_specs=pl.BlockSpec((1, tb), lambda i: (i, 0)),   # lane-dense output
        compiler_params=pltpu.CompilerParams(
            dimension_semantics=("parallel",),
            vmem_limit_bytes=32 * 1024 * 1024,
        ),
    )(xp, w1p, b1p, w2p, b2p, w3p)

    # Un-tile, drop padded rows, add the final (1,1) bias in the wrapper.
    return out.reshape(Bp, 1)[:B] + b3


def init_params(key, in_features, hidden_features):
    """Deterministic init mimicking torch.nn.Linear shapes (stored as (in, out))."""
    ks = jax.random.split(key, 6)

    def lin(kw, kb, fan_in, fan_out):
        bound = 1.0 / jnp.sqrt(jnp.float32(fan_in))
        w = jax.random.uniform(kw, (fan_in, fan_out), jnp.float32, -bound, bound)
        b = jax.random.uniform(kb, (1, fan_out), jnp.float32, -bound, bound)
        return w, b

    w1, b1 = lin(ks[0], ks[1], in_features, hidden_features)
    w2, b2 = lin(ks[2], ks[3], hidden_features, hidden_features)
    w3, b3 = lin(ks[4], ks[5], hidden_features, 1)
    return (w1, b1, w2, b2, w3, b3)


def _reference(x, params):
    """Pure-JAX reference with the same bf16-rounded MXU operands as the kernel."""
    w1, b1, w2, b2, w3, b3 = params
    f32 = lambda a: a.astype(jnp.bfloat16).astype(jnp.float32)
    h1 = jnp.maximum(f32(x) @ f32(w1) + b1, 0.0)
    h2 = jnp.maximum(f32(h1) @ f32(w2) + b2, 0.0)
    return h2 @ w3 + b3


if __name__ == "__main__":
    in_features = 16
    hidden_features = 32
    batch = 8

    key = jax.random.PRNGKey(0)
    kx, kp, kx2 = jax.random.split(key, 3)
    params = init_params(kp, in_features, hidden_features)

    # Small single-tile case.
    x = jax.random.normal(kx, (batch, in_features), jnp.float32)
    out = jax.block_until_ready(deepsurv_forward(x, params))
    assert out.shape == (batch, 1)
    assert jnp.allclose(out, _reference(x, params), atol=1e-3, rtol=1e-3)

    # Multi-tile case with a ragged batch (exercises grid + tail slicing).
    x2 = jax.random.normal(kx2, (300, in_features), jnp.float32)
    out2 = jax.block_until_ready(deepsurv_forward(x2, params, tile_b=128))
    assert out2.shape == (300, 1)
    assert jnp.allclose(out2, _reference(x2, params), atol=1e-3, rtol=1e-3)

    print("KERNEL_OK")
</pallas_src>

<mosaic_0001>
module attributes {stable_mosaic.version = 11 : i64} {
  func.func @_mlp_kernel(%arg0: i32, %arg1: memref<128x16xbf16, #tpu.memory_space<vmem>>, %arg2: memref<16x128xbf16, #tpu.memory_space<vmem>>, %arg3: memref<1x128xf32, #tpu.memory_space<vmem>>, %arg4: memref<128x128xbf16, #tpu.memory_space<vmem>>, %arg5: memref<1x128xf32, #tpu.memory_space<vmem>>, %arg6: memref<1x128xf32, #tpu.memory_space<vmem>>, %arg7: memref<1x128xf32, #tpu.memory_space<vmem>>) attributes {dimension_semantics = [#tpu.dimension_semantics<parallel>], iteration_bounds = array<i64: 1>, scalar_prefetch = 0 : i64, scratch_operands = 0 : i64, tpu.core_type = #tpu.core_type<tc>, window_params = [{transform_indices = @transform_0, window_bounds = array<i64: 128, 16>}, {pipeline_mode = #tpu.pipeline_mode<synchronous>, transform_indices = @transform_1, window_bounds = array<i64: 16, 128>}, {pipeline_mode = #tpu.pipeline_mode<synchronous>, transform_indices = @transform_2, window_bounds = array<i64: 1, 128>}, {pipeline_mode = #tpu.pipeline_mode<synchronous>, transform_indices = @transform_3, window_bounds = array<i64: 128, 128>}, {pipeline_mode = #tpu.pipeline_mode<synchronous>, transform_indices = @transform_4, window_bounds = array<i64: 1, 128>}, {pipeline_mode = #tpu.pipeline_mode<synchronous>, transform_indices = @transform_5, window_bounds = array<i64: 1, 128>}, {transform_indices = @transform_6, window_bounds = array<i64: 1, 128>}]} {
    %c0 = arith.constant 0 : index
    %c0_0 = arith.constant 0 : index
    %0 = vector.load %arg1[%c0, %c0_0] : memref<128x16xbf16, #tpu.memory_space<vmem>>, vector<128x16xbf16>
    %c0_1 = arith.constant 0 : index
    %c0_2 = arith.constant 0 : index
    %1 = vector.load %arg2[%c0_1, %c0_2] : memref<16x128xbf16, #tpu.memory_space<vmem>>, vector<16x128xbf16>
    %cst = arith.constant dense<0.000000e+00> : vector<128x128xf32>
    %2 = tpu.matmul %0, %1, %cst {dimension_numbers = #tpu.dot_dimension_numbers<[1], [0], [0], [1], [0, 0, 1, 1], [], []>} : vector<128x16xbf16>, vector<16x128xbf16>, vector<128x128xf32> -> vector<128x128xf32>
    %c0_3 = arith.constant 0 : index
    %c0_4 = arith.constant 0 : index
    %3 = vector.load %arg3[%c0_3, %c0_4] : memref<1x128xf32, #tpu.memory_space<vmem>>, vector<1x128xf32>
    %4 = vector.broadcast %3 : vector<1x128xf32> to vector<128x128xf32>
    %5 = arith.addf %2, %4 : vector<128x128xf32>
    %cst_5 = arith.constant 0.000000e+00 : f32
    %6 = vector.broadcast %cst_5 : f32 to vector<128x128xf32>
    %7 = arith.maximumf %5, %6 : vector<128x128xf32>
    %8 = arith.truncf %7 : vector<128x128xf32> to vector<128x128xbf16>
    %c0_6 = arith.constant 0 : index
    %c0_7 = arith.constant 0 : index
    %9 = vector.load %arg4[%c0_6, %c0_7] : memref<128x128xbf16, #tpu.memory_space<vmem>>, vector<128x128xbf16>
    %cst_8 = arith.constant dense<0.000000e+00> : vector<128x128xf32>
    %10 = tpu.matmul %8, %9, %cst_8 {dimension_numbers = #tpu.dot_dimension_numbers<[1], [0], [0], [1], [0, 0, 1, 1], [], []>} : vector<128x128xbf16>, vector<128x128xbf16>, vector<128x128xf32> -> vector<128x128xf32>
    %c0_9 = arith.constant 0 : index
    %c0_10 = arith.constant 0 : index
    %11 = vector.load %arg5[%c0_9, %c0_10] : memref<1x128xf32, #tpu.memory_space<vmem>>, vector<1x128xf32>
    %12 = vector.broadcast %11 : vector<1x128xf32> to vector<128x128xf32>
    %13 = arith.addf %10, %12 : vector<128x128xf32>
    %cst_11 = arith.constant 0.000000e+00 : f32
    %14 = vector.broadcast %cst_11 : f32 to vector<128x128xf32>
    %15 = arith.maximumf %13, %14 : vector<128x128xf32>
    %c0_12 = arith.constant 0 : index
    %c0_13 = arith.constant 0 : index
    %16 = vector.load %arg6[%c0_12, %c0_13] : memref<1x128xf32, #tpu.memory_space<vmem>>, vector<1x128xf32>
    %17 = vector.broadcast %16 : vector<1x128xf32> to vector<128x128xf32>
    %18 = arith.mulf %15, %17 : vector<128x128xf32>
    %cst_14 = arith.constant dense<0.000000e+00> : vector<128xf32>
    %19 = vector.multi_reduction <add>, %18, %cst_14 [1] : vector<128x128xf32> to vector<128xf32>
    %20 = vector.shape_cast %19 : vector<128xf32> to vector<1x128xf32>
    %c0_15 = arith.constant 0 : index
    %c0_16 = arith.constant 0 : index
    %21 = vector.load %arg7[%c0_15, %c0_16] : memref<1x128xf32, #tpu.memory_space<vmem>>, vector<1x128xf32>
    tpu.vector_store %arg7[%c0_15, %c0_16], %20 {strides = array<i32>} : memref<1x128xf32, #tpu.memory_space<vmem>>, vector<1x128xf32>,
    return
  }
  func.func @transform_0(%arg0: i32) -> (i32, i32) {
    %c0_i32 = arith.constant 0 : i32
    %c0_i32_0 = arith.constant 0 : i32
    return %arg0, %c0_i32 : i32, i32
  }
  func.func @transform_1(%arg0: i32) -> (i32, i32) {
    %c0_i32 = arith.constant 0 : i32
    %c0_i32_0 = arith.constant 0 : i32
    %c0_i32_1 = arith.constant 0 : i32
    return %c0_i32, %c0_i32_0 : i32, i32
  }
  func.func @transform_2(%arg0: i32) -> (i32, i32) {
    %c0_i32 = arith.constant 0 : i32
    %c0_i32_0 = arith.constant 0 : i32
    %c0_i32_1 = arith.constant 0 : i32
    return %c0_i32, %c0_i32_0 : i32, i32
  }
  func.func @transform_3(%arg0: i32) -> (i32, i32) {
    %c0_i32 = arith.constant 0 : i32
    %c0_i32_0 = arith.constant 0 : i32
    %c0_i32_1 = arith.constant 0 : i32
    return %c0_i32, %c0_i32_0 : i32, i32
  }
  func.func @transform_4(%arg0: i32) -> (i32, i32) {
    %c0_i32 = arith.constant 0 : i32
    %c0_i32_0 = arith.constant 0 : i32
    %c0_i32_1 = arith.constant 0 : i32
    return %c0_i32, %c0_i32_0 : i32, i32
  }
  func.func @transform_5(%arg0: i32) -> (i32, i32) {
    %c0_i32 = arith.constant 0 : i32
    %c0_i32_0 = arith.constant 0 : i32
    %c0_i32_1 = arith.constant 0 : i32
    return %c0_i32, %c0_i32_0 : i32, i32
  }
  func.func @transform_6(%arg0: i32) -> (i32, i32) {
    %c0_i32 = arith.constant 0 : i32
    %c0_i32_0 = arith.constant 0 : i32
    return %arg0, %c0_i32 : i32, i32
  }
}

</mosaic_0001>

<llo_original>
// kernel: tpu_custom_call.1
$region0: #{tpu_custom_call.1}
  #allocation0 [shape = 'u32[]', space=smem, size = 0x4, offset = 0x4, fixed_abs, tag = 'smem constant byte address 0x4 - core index']
  #allocation1 [shape = 'u32[72,128]{1,0:T(1,128)}', space=vmem, size = 0x9000, scoped, tag = 'internal scratch']
  %s0 = inlined_call_operand.vmem [shape: bf16[128,16], index: 0, kind: input, shape index: {}]
  %s1 = inlined_call_operand.vmem [shape: bf16[16,128], index: 1, kind: input, shape index: {}]
  %s2 = inlined_call_operand.vmem [shape: f32[1,128], index: 2, kind: input, shape index: {}]
  %s3 = inlined_call_operand.vmem [shape: bf16[128,128], index: 3, kind: input, shape index: {}]
  %s4 = inlined_call_operand.vmem [shape: f32[1,128], index: 4, kind: input, shape index: {}]
  %s5 = inlined_call_operand.vmem [shape: f32[1,128], index: 5, kind: input, shape index: {}]
  %s6 = inlined_call_operand.hbm [shape: f32[1,128], index: 6, kind: output, shape index: {}]
  %s7 = sld [smem:[#allocation0]]
  $region34: #{tpu_custom_call.1} parent=0
    _
  %s9 = ssub.s32 1, %s7
  %s10 = scalar_select 0, %s9, %s7
  $region1: #{tpu_custom_call.1} parent=0
    #allocation2 [shape = 'u8[512]{0}', space=vmem, size = 0x400, scoped, tag = 'output window, operand 0, single buffered']
    #allocation3 [shape = 's32[1]{0}', space=sflag, size = 0x4, scoped, tag = 'scoped memory for tpu_custom_call.1']
    %11 = vsyncpa [#allocation3], 0
    // Predicated region
    $region2: #{tpu_custom_call.1} parent=1 // pred_check
      _
    $region3: #{tpu_custom_call.1} parent=1 // pred_check_branch
      %13 = sbr.rel (0) target = $region5
    $region4: #{tpu_custom_call.1} parent=1 // pred_region
      _
    $region5: #{tpu_custom_call.1} parent=1 // pred_fallthru
      _
    // Predicated region
    $region6: #{tpu_custom_call.1} parent=1 // pred_check
      _
    $region7: #{tpu_custom_call.1} parent=1 // pred_check_branch
      %15 = sbr.rel (0) target = $region9
    $region8: #{tpu_custom_call.1} parent=1 // pred_region
      _
    $region9: #{tpu_custom_call.1} parent=1 // pred_fallthru
      _
    // Predicated region
    $region10: #{tpu_custom_call.1} parent=1 // pred_check
      _
    $region11: #{tpu_custom_call.1} parent=1 // pred_check_branch
      %17 = sbr.rel (0) target = $region13
    $region12: #{tpu_custom_call.1} parent=1 // pred_region
      _
    $region13: #{tpu_custom_call.1} parent=1 // pred_fallthru
      _
    // Predicated region
    $region14: #{tpu_custom_call.1} parent=1 // pred_check
      _
    $region15: #{tpu_custom_call.1} parent=1 // pred_check_branch
      %19 = sbr.rel (0) target = $region17
    $region16: #{tpu_custom_call.1} parent=1 // pred_region
      _
    $region17: #{tpu_custom_call.1} parent=1 // pred_fallthru
      _
    // Predicated region
    $region18: #{tpu_custom_call.1} parent=1 // pred_check
      _
    $region19: #{tpu_custom_call.1} parent=1 // pred_check_branch
      %21 = sbr.rel (0) target = $region21
    $region20: #{tpu_custom_call.1} parent=1 // pred_region
      _
    $region21: #{tpu_custom_call.1} parent=1 // pred_fallthru
      _
    // Predicated region
    $region22: #{tpu_custom_call.1} parent=1 // pred_check
      _
    $region23: #{tpu_custom_call.1} parent=1 // pred_check_branch
      %23 = sbr.rel (0) target = $region25
    $region24: #{tpu_custom_call.1} parent=1 // pred_region
      _
    $region25: #{tpu_custom_call.1} parent=1 // pred_fallthru
      _
    %v25 = vld [vmem:[%s0] sm:$0xf]
    %v26 = vld [vmem:[%s0 + $0x4] sm:$0xf]
    %v27 = vld [vmem:[%s0 + $0x8] sm:$0xf]
    %v28 = vld [vmem:[%s0 + $0xc] sm:$0xf]
    %v29 = vld [vmem:[%s0 + $0x10] sm:$0xf]
    %v30 = vld [vmem:[%s0 + $0x14] sm:$0xf]
    %v31 = vld [vmem:[%s0 + $0x18] sm:$0xf]
    %v32 = vld [vmem:[%s0 + $0x1c] sm:$0xf]
    %v33 = vld [vmem:[%s0 + $0x20] sm:$0xf]
    %v34 = vld [vmem:[%s0 + $0x24] sm:$0xf]
    %v35 = vld [vmem:[%s0 + $0x28] sm:$0xf]
    %v36 = vld [vmem:[%s0 + $0x2c] sm:$0xf]
    %v37 = vld [vmem:[%s0 + $0x30] sm:$0xf]
    %v38 = vld [vmem:[%s0 + $0x34] sm:$0xf]
    %v39 = vld [vmem:[%s0 + $0x38] sm:$0xf]
    %v40 = vld [vmem:[%s0 + $0x3c] sm:$0xf]
    %v41 = vld [vmem:[%s1] sm:$0xf]
    %v42 = vld [vmem:[%s1 + $0x4] sm:$0xf]
    %v43 = vld [vmem:[%s2] sm:$0x1]
    %v45 = vperm.slane %v43, 0
    %v63 = vunpack.c.l.b16 %v25
    %v64 = vunpack.c.l.b16 %v26
    %v65 = vunpack.c.l.b16 %v27
    %v66 = vunpack.c.l.b16 %v28
    %v67 = vunpack.c.l.b16 %v29
    %v68 = vunpack.c.l.b16 %v30
    %v69 = vunpack.c.l.b16 %v31
    %v70 = vunpack.c.l.b16 %v32
    %v71 = vunpack.c.l.b16 %v33
    %v72 = vunpack.c.l.b16 %v34
    %v73 = vunpack.c.l.b16 %v35
    %v74 = vunpack.c.l.b16 %v36
    %v75 = vunpack.c.l.b16 %v37
    %v76 = vunpack.c.l.b16 %v38
    %v77 = vunpack.c.l.b16 %v39
    %v78 = vunpack.c.l.b16 %v40
    %v79 = vpack.c.b16 %v64, %v63
    %v80 = vpack.c.b16 %v66, %v65
    %v81 = vpack.c.b16 %v68, %v67
    %v82 = vpack.c.b16 %v70, %v69
    %v83 = vpack.c.b16 %v72, %v71
    %v84 = vpack.c.b16 %v74, %v73
    %v85 = vpack.c.b16 %v76, %v75
    %v86 = vpack.c.b16 %v78, %v77
    %v89 = vunpack.c.l.b16 %v41
    %v90 = vunpack.c.l.b16 %v42
    %v91 = vpack.c.b16 %v90, %v89
    %vm93 = vcmask 130048
    %v95 = vsel %vm93, %v79, 0
    %v98 = vsel %vm93, %v80, 0
    %v101 = vsel %vm93, %v81, 0
    %v104 = vsel %vm93, %v82, 0
    %v107 = vsel %vm93, %v83, 0
    %v110 = vsel %vm93, %v84, 0
    %v113 = vsel %vm93, %v85, 0
    %v116 = vsel %vm93, %v86, 0
    %118 = vmatpush.bf16.msra.mxu0 0
    %119 = vmatpush.bf16.msra.mxu0 0
    %120 = vmatpush.bf16.msra.mxu0 0
    %121 = vmatpush.bf16.msra.mxu0 0
    %122 = vmatpush.bf16.msra.mxu0 0
    %123 = vmatpush.bf16.msra.mxu0 0
    %124 = vmatpush.bf16.msra.mxu0 0
    %125 = vmatpush.bf16.msra.mxu0 %v91
    %126 = vmatmul.bf16.gmra.mxu0 %v95
    %v127 = vpop.f32.mrf.mxu0
    %v128 = vadd.f32 %v45, %v127
    %v129 = vpop.f32.mrf.mxu0
    %v130 = vadd.f32 %v45, %v129
    %131 = vmatmul.bf16.gmra.mxu0 %v98
    %v132 = vpop.f32.mrf.mxu0
    %v133 = vadd.f32 %v45, %v132
    %v134 = vpop.f32.mrf.mxu0
    %v135 = vadd.f32 %v45, %v134
    %136 = vmatmul.bf16.gmra.mxu0 %v101
    %v137 = vpop.f32.mrf.mxu0
    %v138 = vadd.f32 %v45, %v137
    %v139 = vpop.f32.mrf.mxu0
    %v140 = vadd.f32 %v45, %v139
    %141 = vmatmul.bf16.gmra.mxu0 %v104
    %v142 = vpop.f32.mrf.mxu0
    %v143 = vadd.f32 %v45, %v142
    %v144 = vpop.f32.mrf.mxu0
    %v145 = vadd.f32 %v45, %v144
    %146 = vmatmul.bf16.gmra.mxu0 %v107
    %v147 = vpop.f32.mrf.mxu0
    %v148 = vadd.f32 %v45, %v147
    %v149 = vpop.f32.mrf.mxu0
    %v150 = vadd.f32 %v45, %v149
    %151 = vmatmul.bf16.gmra.mxu0 %v110
    %v152 = vpop.f32.mrf.mxu0
    %v153 = vadd.f32 %v45, %v152
    %v154 = vpop.f32.mrf.mxu0
    %v155 = vadd.f32 %v45, %v154
    %156 = vmatmul.bf16.gmra.mxu0 %v113
    %v157 = vpop.f32.mrf.mxu0
    %v158 = vadd.f32 %v45, %v157
    %v159 = vpop.f32.mrf.mxu0
    %v160 = vadd.f32 %v45, %v159
    %161 = vmatmul.bf16.gmra.mxu0 %v116
    %v162 = vpop.f32.mrf.mxu0
    %v163 = vadd.f32 %v45, %v162
    %v164 = vpop.f32.mrf.mxu0
    %v165 = vadd.f32 %v45, %v164
    %166 = vdwg.mxu0
    %v167 = vmax.f32 %v128, 0.0
    %v168 = vmax.f32 %v130, 0.0
    %v169 = vmax.f32 %v133, 0.0
    %v170 = vmax.f32 %v135, 0.0
    %v171 = vmax.f32 %v138, 0.0
    %v172 = vmax.f32 %v140, 0.0
    %v173 = vmax.f32 %v143, 0.0
    %v174 = vmax.f32 %v145, 0.0
    %v175 = vmax.f32 %v148, 0.0
    %v176 = vmax.f32 %v150, 0.0
    %v177 = vmax.f32 %v153, 0.0
    %v178 = vmax.f32 %v155, 0.0
    %v179 = vmax.f32 %v158, 0.0
    %v180 = vmax.f32 %v160, 0.0
    %v181 = vmax.f32 %v163, 0.0
    %v182 = vmax.f32 %v165, 0.0
    %v183 = vpack.c.bf16 %v168, %v167
    %v184 = vpack.c.bf16 %v170, %v169
    %v185 = vpack.c.bf16 %v172, %v171
    %v186 = vpack.c.bf16 %v174, %v173
    %v187 = vpack.c.bf16 %v176, %v175
    %v188 = vpack.c.bf16 %v178, %v177
    %v189 = vpack.c.bf16 %v180, %v179
    %v190 = vpack.c.bf16 %v182, %v181
    %v191 = vld [vmem:[%s3] sm:$0xf]
    %v192 = vld [vmem:[%s3 + $0x4] sm:$0xf]
    %v193 = vld [vmem:[%s3 + $0x8] sm:$0xf]
    %v194 = vld [vmem:[%s3 + $0xc] sm:$0xf]
    %v195 = vld [vmem:[%s3 + $0x10] sm:$0xf]
    %v196 = vld [vmem:[%s3 + $0x14] sm:$0xf]
    %v197 = vld [vmem:[%s3 + $0x18] sm:$0xf]
    %v198 = vld [vmem:[%s3 + $0x1c] sm:$0xf]
    %v199 = vld [vmem:[%s3 + $0x20] sm:$0xf]
    %v200 = vld [vmem:[%s3 + $0x24] sm:$0xf]
    %v201 = vld [vmem:[%s3 + $0x28] sm:$0xf]
    %v202 = vld [vmem:[%s3 + $0x2c] sm:$0xf]
    %v203 = vld [vmem:[%s3 + $0x30] sm:$0xf]
    %v204 = vld [vmem:[%s3 + $0x34] sm:$0xf]
    %v205 = vld [vmem:[%s3 + $0x38] sm:$0xf]
    %v206 = vld [vmem:[%s3 + $0x3c] sm:$0xf]
    %v207 = vld [vmem:[%s4] sm:$0x1]
    %v209 = vperm.slane %v207, 0
    %v227 = vunpack.c.l.b16 %v191
    %v228 = vunpack.c.l.b16 %v192
    %v229 = vunpack.c.l.b16 %v193
    %v230 = vunpack.c.l.b16 %v194
    %v231 = vunpack.c.l.b16 %v195
    %v232 = vunpack.c.l.b16 %v196
    %v233 = vunpack.c.l.b16 %v197
    %v234 = vunpack.c.l.b16 %v198
    %v235 = vunpack.c.l.b16 %v199
    %v236 = vunpack.c.l.b16 %v200
    %v237 = vunpack.c.l.b16 %v201
    %v238 = vunpack.c.l.b16 %v202
    %v239 = vunpack.c.l.b16 %v203
    %v240 = vunpack.c.l.b16 %v204
    %v241 = vunpack.c.l.b16 %v205
    %v242 = vunpack.c.l.b16 %v206
    %v243 = vpack.c.b16 %v228, %v227
    %v244 = vpack.c.b16 %v230, %v229
    %v245 = vpack.c.b16 %v232, %v231
    %v246 = vpack.c.b16 %v234, %v233
    %v247 = vpack.c.b16 %v236, %v235
    %v248 = vpack.c.b16 %v238, %v237
    %v249 = vpack.c.b16 %v240, %v239
    %v250 = vpack.c.b16 %v242, %v241
    %259 = vmatpush.bf16.msra.mxu0 %v250
    %260 = vmatpush.bf16.msra.mxu0 %v249
    %261 = vmatpush.bf16.msra.mxu0 %v248
    %262 = vmatpush.bf16.msra.mxu0 %v247
    %263 = vmatpush.bf16.msra.mxu0 %v246
    %264 = vmatpush.bf16.msra.mxu0 %v245
    %265 = vmatpush.bf16.msra.mxu0 %v244
    %266 = vmatpush.bf16.msra.mxu0 %v243
    %267 = vmatmul.bf16.gmra.mxu0 %v183
    %v268 = vpop.f32.mrf.mxu0
    %v269 = vadd.f32 %v209, %v268
    %v270 = vpop.f32.mrf.mxu0
    %v271 = vadd.f32 %v209, %v270
    %272 = vmatmul.bf16.gmra.mxu0 %v184
    %v273 = vpop.f32.mrf.mxu0
    %v274 = vadd.f32 %v209, %v273
    %v275 = vpop.f32.mrf.mxu0
    %v276 = vadd.f32 %v209, %v275
    %277 = vmatmul.bf16.gmra.mxu0 %v185
    %v278 = vpop.f32.mrf.mxu0
    %v279 = vadd.f32 %v209, %v278
    %v280 = vpop.f32.mrf.mxu0
    %v281 = vadd.f32 %v209, %v280
    %282 = vmatmul.bf16.gmra.mxu0 %v186
    %v283 = vpop.f32.mrf.mxu0
    %v284 = vadd.f32 %v209, %v283
    %v285 = vpop.f32.mrf.mxu0
    %v286 = vadd.f32 %v209, %v285
    %287 = vmatmul.bf16.gmra.mxu0 %v187
    %v288 = vpop.f32.mrf.mxu0
    %v289 = vadd.f32 %v209, %v288
    %v290 = vpop.f32.mrf.mxu0
    %v291 = vadd.f32 %v209, %v290
    %292 = vmatmul.bf16.gmra.mxu0 %v188
    %v293 = vpop.f32.mrf.mxu0
    %v294 = vadd.f32 %v209, %v293
    %v295 = vpop.f32.mrf.mxu0
    %v296 = vadd.f32 %v209, %v295
    %297 = vmatmul.bf16.gmra.mxu0 %v189
    %v298 = vpop.f32.mrf.mxu0
    %v299 = vadd.f32 %v209, %v298
    %v300 = vpop.f32.mrf.mxu0
    %v301 = vadd.f32 %v209, %v300
    %302 = vmatmul.bf16.gmra.mxu0 %v190
    %v303 = vpop.f32.mrf.mxu0
    %v304 = vadd.f32 %v209, %v303
    %v305 = vpop.f32.mrf.mxu0
    %v306 = vadd.f32 %v209, %v305
    %307 = vdwg.mxu0
    %v308 = vmax.f32 %v269, 0.0
    %v309 = vmax.f32 %v271, 0.0
    %v310 = vmax.f32 %v274, 0.0
    %v311 = vmax.f32 %v276, 0.0
    %v312 = vmax.f32 %v279, 0.0
    %v313 = vmax.f32 %v281, 0.0
    %v314 = vmax.f32 %v284, 0.0
    %v315 = vmax.f32 %v286, 0.0
    %v316 = vmax.f32 %v289, 0.0
    %v317 = vmax.f32 %v291, 0.0
    %v318 = vmax.f32 %v294, 0.0
    %v319 = vmax.f32 %v296, 0.0
    %v320 = vmax.f32 %v299, 0.0
    %v321 = vmax.f32 %v301, 0.0
    %v322 = vmax.f32 %v304, 0.0
    %v323 = vmax.f32 %v306, 0.0
    %v324 = vld [vmem:[%s5] sm:$0x1]
    %v326 = vperm.slane %v324, 0
    %v328 = vmul.f32 %v308, %v326
    %v329 = vmul.f32 %v309, %v326
    %v330 = vmul.f32 %v310, %v326
    %v331 = vmul.f32 %v311, %v326
    %v332 = vmul.f32 %v312, %v326
    %v333 = vmul.f32 %v313, %v326
    %v334 = vmul.f32 %v314, %v326
    %v335 = vmul.f32 %v315, %v326
    %v336 = vmul.f32 %v316, %v326
    %v337 = vmul.f32 %v317, %v326
    %v338 = vmul.f32 %v318, %v326
    %v339 = vmul.f32 %v319, %v326
    %v340 = vmul.f32 %v320, %v326
    %v341 = vmul.f32 %v321, %v326
    %v342 = vmul.f32 %v322, %v326
    %v343 = vmul.f32 %v323, %v326
    %344 = vadd.xlane.f32.xlu0 %v328
    %v345 = vpop.xlane.xlu0 %344
    %346 = vadd.xlane.f32.xlu0 %v329
    %v347 = vpop.xlane.xlu0 %346
    %348 = vadd.xlane.f32.xlu0 %v330
    %v349 = vpop.xlane.xlu0 %348
    %350 = vadd.xlane.f32.xlu0 %v331
    %v351 = vpop.xlane.xlu0 %350
    %352 = vadd.xlane.f32.xlu0 %v332
    %v353 = vpop.xlane.xlu0 %352
    %354 = vadd.xlane.f32.xlu0 %v333
    %v355 = vpop.xlane.xlu0 %354
    %356 = vadd.xlane.f32.xlu0 %v334
    %v357 = vpop.xlane.xlu0 %356
    %358 = vadd.xlane.f32.xlu0 %v335
    %v359 = vpop.xlane.xlu0 %358
    %360 = vadd.xlane.f32.xlu0 %v336
    %v361 = vpop.xlane.xlu0 %360
    %362 = vadd.xlane.f32.xlu0 %v337
    %v363 = vpop.xlane.xlu0 %362
    %364 = vadd.xlane.f32.xlu0 %v338
    %v365 = vpop.xlane.xlu0 %364
    %366 = vadd.xlane.f32.xlu0 %v339
    %v367 = vpop.xlane.xlu0 %366
    %368 = vadd.xlane.f32.xlu0 %v340
    %v369 = vpop.xlane.xlu0 %368
    %370 = vadd.xlane.f32.xlu0 %v341
    %v371 = vpop.xlane.xlu0 %370
    %372 = vadd.xlane.f32.xlu0 %v342
    %v373 = vpop.xlane.xlu0 %372
    %374 = vadd.xlane.f32.xlu0 %v343
    %v375 = vpop.xlane.xlu0 %374
    %v392 = vlaneseq
    %v393 = vand.u32 %v392, 127
    %v394 = vperm.slane %v345, %v393
    %v395 = vadd.s32 %v393, 4294967288
    %v396 = vperm.slane %v347, %v395
    %vm397 = vcmask 130112
    %v398 = vsel %vm397, %v396, %v394
    %v399 = vadd.s32 %v393, 4294967280
    %v400 = vperm.slane %v349, %v399
    %vm401 = vcmask 195712
    %v402 = vsel %vm401, %v400, %v398
    %v403 = vadd.s32 %v393, 4294967272
    %v404 = vperm.slane %v351, %v403
    %vm405 = vcmask 261312
    %v406 = vsel %vm405, %v404, %v402
    %v407 = vadd.s32 %v393, 4294967264
    %v408 = vperm.slane %v353, %v407
    %vm409 = vcmask 326912
    %v410 = vsel %vm409, %v408, %v406
    %v411 = vadd.s32 %v393, 4294967256
    %v412 = vperm.slane %v355, %v411
    %vm413 = vcmask 392512
    %v414 = vsel %vm413, %v412, %v410
    %v415 = vadd.s32 %v393, 4294967248
    %v416 = vperm.slane %v357, %v415
    %vm417 = vcmask 458112
    %v418 = vsel %vm417, %v416, %v414
    %v419 = vadd.s32 %v393, 4294967240
    %v420 = vperm.slane %v359, %v419
    %vm421 = vcmask 523712
    %v422 = vsel %vm421, %v420, %v418
    %v423 = vadd.s32 %v393, 4294967232
    %v424 = vperm.slane %v361, %v423
    %vm425 = vcmask 589312
    %v426 = vsel %vm425, %v424, %v422
    %v427 = vadd.s32 %v393, 4294967224
    %v428 = vperm.slane %v363, %v427
    %vm429 = vcmask 654912
    %v430 = vsel %vm429, %v428, %v426
    %v431 = vadd.s32 %v393, 4294967216
    %v432 = vperm.slane %v365, %v431
    %vm433 = vcmask 720512
    %v434 = vsel %vm433, %v432, %v430
    %v435 = vadd.s32 %v393, 4294967208
    %v436 = vperm.slane %v367, %v435
    %vm437 = vcmask 786112
    %v438 = vsel %vm437, %v436, %v434
    %v439 = vadd.s32 %v393, 4294967200
    %v440 = vperm.slane %v369, %v439
    %vm441 = vcmask 851712
    %v442 = vsel %vm441, %v440, %v438
    %v443 = vadd.s32 %v393, 4294967192
    %v444 = vperm.slane %v371, %v443
    %vm445 = vcmask 917312
    %v446 = vsel %vm445, %v444, %v442
    %v447 = vadd.s32 %v393, 4294967184
    %v448 = vperm.slane %v373, %v447
    %vm449 = vcmask 982912
    %v450 = vsel %vm449, %v448, %v446
    %v451 = vadd.s32 %v393, 4294967176
    %v452 = vperm.slane %v375, %v451
    %vm453 = vcmask 1048512
    %v454 = vsel %vm453, %v452, %v450
    %456 = vst [vmem:[#allocation2] sm:$0x1] %v454
    // Predicated region
    $region26: #{tpu_custom_call.1} parent=1 // pred_check
      _
    $region27: #{tpu_custom_call.1} parent=1 // pred_check_branch
      %458 = sbr.rel (0) target = $region29
    $region28: #{tpu_custom_call.1} parent=1 // pred_region
      %460 = vsyncadd [#allocation3], 0
      %s462 = sshll.u32 [#allocation2], 4
      %s463 = int_to_ptr.vmem [resolvable:$true] %s462
      %s464 = sshll.u32 %s6, 4
      %s465 = int_to_ptr.hbm [resolvable:$true] %s464
      %467 = dma.vmem_to_hbm [thread:$0]  %s463, 16, %s465, [#allocation3]
    $region29: #{tpu_custom_call.1} parent=1 // pred_fallthru
      _
    // Predicated region
    $region30: #{tpu_custom_call.1} parent=1 // pred_check
      _
    $region31: #{tpu_custom_call.1} parent=1 // pred_check_branch
      %469 = sbr.rel (0) target = $region33
    $region32: #{tpu_custom_call.1} parent=1 // pred_region
      %471 = dma.done [#allocation3], 16
    $region33: #{tpu_custom_call.1} parent=1 // pred_fallthru
      _
    %472 = vsyncpa [#allocation3], 1

</llo_original>
